<compile_context>
chip_gen: v5e
topology: v5e:2x2
jax: 0.10.0
libtpu: 0.0.40
codegen_flags: <defaults>
</compile_context>

<pallas_src>
import functools

import jax
import jax.numpy as jnp
from jax import lax
from jax.experimental import pallas as pl
from jax.experimental.pallas import tpu as pltpu


def _dilated_residual_kernel(xl_ref, xc_ref, xr_ref, m_ref, wd_ref, bd_ref,
                             w1_ref, b1_ref, o_ref, *, dilation, halo):
    # xl_ref: (1, C, H)   left halo   (global time [t0-H, t0))
    # xc_ref: (1, C, tT)  center tile (global time [t0, t0+tT))
    # xr_ref: (1, C, H)   right halo  (global time [t0+tT, t0+tT+H))
    # m_ref : (1, 1, tT)  mask channel 0
    # wd_ref: (C, 3C)     fused dilated-conv weight (bf16), taps [t-d | t | t+d]
    # bd_ref: (C, 1)      dilated-conv bias (f32)
    # w1_ref: (C, C)      1x1-conv weight (bf16)
    # b1_ref: (C, 1)      1x1-conv bias (f32)
    d, H = dilation, halo

    xc_f32 = xc_ref[0].astype(jnp.float32)                  # residual path, f32
    tT = xc_f32.shape[1]

    xc_bf = xc_ref[0].astype(jnp.bfloat16)                  # (C, tT)
    # x[:, t - d]: last d cols of the left halo followed by the first tT-d
    # center cols.  x[:, t + d]: center cols d.. followed by the first d right
    # halo cols.  Only tT-wide operands are built (no full-window concat).
    x_prev = jnp.concatenate(
        [xl_ref[0, :, H - d:].astype(jnp.bfloat16), xc_bf[:, :tT - d]], axis=1)
    x_next = jnp.concatenate(
        [xc_bf[:, d:], xr_ref[0, :, :d].astype(jnp.bfloat16)], axis=1)

    # Fused 3-tap dilated conv: one (C, 3C) @ (3C, tT) matmul on the MXU.
    xcat = jnp.concatenate([x_prev, xc_bf, x_next], axis=0)  # (3C, tT) bf16
    acc = jnp.dot(wd_ref[...], xcat, preferred_element_type=jnp.float32)

    y = jnp.maximum(acc + bd_ref[...], 0.0)                  # bias + ReLU (f32)
    z = jnp.dot(w1_ref[...], y.astype(jnp.bfloat16),
                preferred_element_type=jnp.float32) + b1_ref[...]

    # TODO(synk): nn.Dropout(0.5) is identity in eval mode; training-mode
    # dropout would use pltpu.prng_seed / pltpu.prng_random_bits here.
    out = xc_f32 + z                                         # residual (f32)
    o_ref[0] = (out * m_ref[0]).astype(o_ref.dtype)          # mask ch0 bcast


def dilated_residual_layer(x, mask, wd, bd, w1, b1, *, dilation, time_tile=1024):
    """MS-TCN DilatedResidualLayer forward.

    x    : (N, C, T)  float32
    mask : (N, Cm, T) float32 (only channel 0 is used, as in PyTorch)
    wd   : (C, C, 3)  dilated-conv weight, PyTorch Conv1d layout
    bd   : (C,)       dilated-conv bias
    w1   : (C, C, 1)  1x1-conv weight, PyTorch Conv1d layout
    b1   : (C,)       1x1-conv bias
    """
    N, C, T = x.shape
    d = int(dilation)

    # Halo width: lane-aligned, >= dilation.  Time tile: multiple of H (and of
    # 128) and strictly larger than d, so halo block indices are exact.
    H = max(128, ((d + 127) // 128) * 128)
    tT = max(((time_tile + H - 1) // H) * H, 2 * H)
    r = tT // H
    n_t = pl.cdiv(T, tT)
    T_pad = n_t * tT
    L = (n_t + 2) * tT  # one leading zero tile + T_pad + one trailing zero tile

    # Zero padding doubles as the conv's zero padding and as the halo source
    # for the first/last tiles; trailing zeros also make stores lane-dense.
    x_big = jnp.pad(x, ((0, 0), (0, 0), (tT, L - tT - T)))
    m_pad = jnp.pad(mask[:, 0:1, :].astype(jnp.float32),
                    ((0, 0), (0, 0), (0, T_pad - T)))

    # Fused tap-major weight (C_out, 3*C_in): [k=0 (t-d) | k=1 (t) | k=2 (t+d)].
    wd2 = jnp.transpose(wd, (0, 2, 1)).reshape(C, 3 * C).astype(jnp.bfloat16)
    w1m = w1.reshape(C, C).astype(jnp.bfloat16)
    bd2 = bd.reshape(C, 1).astype(jnp.float32)
    b12 = b1.reshape(C, 1).astype(jnp.float32)

    # Explicit VMEM budget: double-buffered streamed blocks + weights +
    # in-kernel temporaries, capped at 64 MiB so it also holds on v7x.
    est = (2 * (C * tT + 2 * C * H + tT + C * tT) * 4      # streamed blocks x2
           + 2 * (3 * C * C + C * C) * 2 + 4 * C * 4       # weights / biases
           + 12 * C * tT * 4)                               # in-kernel temps
    vmem_limit = int(min(64 * 1024 * 1024, max(32 * 1024 * 1024, est)))

    kernel = functools.partial(_dilated_residual_kernel, dilation=d, halo=H)
    out_pad = pl.pallas_call(
        kernel,
        out_shape=jax.ShapeDtypeStruct((N, C, T_pad), x.dtype),
        grid_spec=pltpu.PrefetchScalarGridSpec(
            num_scalar_prefetch=0,
            grid=(N, n_t),
            in_specs=[
                # left halo: last H columns before the center tile
                pl.BlockSpec((1, C, H), lambda b, t: (b, 0, (t + 1) * r - 1)),
                # center tile (leading zero tile shifts the block index by 1)
                pl.BlockSpec((1, C, tT), lambda b, t: (b, 0, t + 1)),
                # right halo: first H columns after the center tile
                pl.BlockSpec((1, C, H), lambda b, t: (b, 0, (t + 2) * r)),
                # mask channel 0
                pl.BlockSpec((1, 1, tT), lambda b, t: (b, 0, t)),
                # weights / biases (constant index_map -> fetched once)
                pl.BlockSpec((C, 3 * C), lambda b, t: (0, 0)),
                pl.BlockSpec((C, 1), lambda b, t: (0, 0)),
                pl.BlockSpec((C, C), lambda b, t: (0, 0)),
                pl.BlockSpec((C, 1), lambda b, t: (0, 0)),
            ],
            out_specs=pl.BlockSpec((1, C, tT), lambda b, t: (b, 0, t)),
        ),
        compiler_params=pltpu.CompilerParams(
            dimension_semantics=("parallel", "parallel"),
            vmem_limit_bytes=vmem_limit),
    )(x_big, x_big, x_big, m_pad, wd2, bd2, w1m, b12)

    return out_pad[:, :, :T]


def _reference(x, mask, wd, bd, w1, b1, *, dilation):
    """Pure-JAX f32 reference matching the PyTorch module (eval mode)."""
    N, C, T = x.shape
    d = dilation
    xp = jnp.pad(x, ((0, 0), (0, 0), (d, d)))
    acc = jnp.broadcast_to(bd.reshape(1, C, 1), (N, C, T)).astype(jnp.float32)
    for k in range(3):
        xs = lax.dynamic_slice_in_dim(xp, k * d, T, axis=2)  # x[:, :, t+(k-1)d]
        acc = acc + jnp.einsum("oi,nit->not", wd[:, :, k], xs)
    y = jnp.maximum(acc, 0.0)
    z = jnp.einsum("oi,nit->not", w1[:, :, 0], y) + b1.reshape(1, C, 1)
    return (x + z) * mask[:, 0:1, :]


if __name__ == "__main__":
    # Small shapes consistent with the module (in_channels == out_channels is
    # required by the residual add).  T deliberately not a multiple of 128.
    N, C, T = 2, 16, 200
    dilation = 2

    key = jax.random.PRNGKey(0)
    kx, km, k0, k1, k2, k3 = jax.random.split(key, 6)

    x = jax.random.normal(kx, (N, C, T), dtype=jnp.float32)
    mask = (jax.random.uniform(km, (N, C, T)) > 0.2).astype(jnp.float32)

    # PyTorch Conv1d-style parameters / init bounds.
    bound_d = 1.0 / jnp.sqrt(3.0 * C)
    wd = jax.random.uniform(k0, (C, C, 3), jnp.float32, -bound_d, bound_d)
    bd = jax.random.uniform(k1, (C,), jnp.float32, -bound_d, bound_d)
    bound_1 = 1.0 / jnp.sqrt(1.0 * C)
    w1 = jax.random.uniform(k2, (C, C, 1), jnp.float32, -bound_1, bound_1)
    b1 = jax.random.uniform(k3, (C,), jnp.float32, -bound_1, bound_1)

    out = dilated_residual_layer(x, mask, wd, bd, w1, b1,
                                 dilation=dilation, time_tile=256)
    out = jax.block_until_ready(out)
    assert out.shape == (N, C, T)

    ref = _reference(x, mask, wd, bd, w1, b1, dilation=dilation)
    max_err = float(jnp.max(jnp.abs(out - ref)))
    assert max_err < 0.1, f"kernel/reference mismatch: max_err={max_err}"

    print("KERNEL_OK")
</pallas_src>

<mosaic_0001>
module attributes {stable_mosaic.version = 11 : i64} {
  func.func @_dilated_residual_kernel(%arg0: i32, %arg1: i32, %arg2: memref<1x16x128xf32, #tpu.memory_space<vmem>>, %arg3: memref<1x16x256xf32, #tpu.memory_space<vmem>>, %arg4: memref<1x16x128xf32, #tpu.memory_space<vmem>>, %arg5: memref<1x1x256xf32, #tpu.memory_space<vmem>>, %arg6: memref<16x48xbf16, #tpu.memory_space<vmem>>, %arg7: memref<16x1xf32, #tpu.memory_space<vmem>>, %arg8: memref<16x16xbf16, #tpu.memory_space<vmem>>, %arg9: memref<16x1xf32, #tpu.memory_space<vmem>>, %arg10: memref<1x16x256xf32, #tpu.memory_space<vmem>>) attributes {dimension_semantics = [#tpu.dimension_semantics<parallel>, #tpu.dimension_semantics<parallel>], iteration_bounds = array<i64: 2, 1>, scalar_prefetch = 0 : i64, scratch_operands = 0 : i64, tpu.core_type = #tpu.core_type<tc>, window_params = [{transform_indices = @transform_0, window_bounds = array<i64: 1, 16, 128>}, {transform_indices = @transform_1, window_bounds = array<i64: 1, 16, 256>}, {transform_indices = @transform_2, window_bounds = array<i64: 1, 16, 128>}, {transform_indices = @transform_3, window_bounds = array<i64: 1, 1, 256>}, {pipeline_mode = #tpu.pipeline_mode<synchronous>, transform_indices = @transform_4, window_bounds = array<i64: 16, 48>}, {pipeline_mode = #tpu.pipeline_mode<synchronous>, transform_indices = @transform_5, window_bounds = array<i64: 16, 1>}, {pipeline_mode = #tpu.pipeline_mode<synchronous>, transform_indices = @transform_6, window_bounds = array<i64: 16, 16>}, {pipeline_mode = #tpu.pipeline_mode<synchronous>, transform_indices = @transform_7, window_bounds = array<i64: 16, 1>}, {transform_indices = @transform_8, window_bounds = array<i64: 1, 16, 256>}]} {
    %c0 = arith.constant 0 : index
    %c0_0 = arith.constant 0 : index
    %c0_1 = arith.constant 0 : index
    %0 = vector.load %arg3[%c0, %c0_0, %c0_1] : memref<1x16x256xf32, #tpu.memory_space<vmem>>, vector<1x16x256xf32>
    %1 = vector.shape_cast %0 : vector<1x16x256xf32> to vector<16x256xf32>
    %c0_2 = arith.constant 0 : index
    %c0_3 = arith.constant 0 : index
    %c0_4 = arith.constant 0 : index
    %2 = vector.load %arg3[%c0_2, %c0_3, %c0_4] : memref<1x16x256xf32, #tpu.memory_space<vmem>>, vector<1x16x256xf32>
    %3 = vector.shape_cast %2 : vector<1x16x256xf32> to vector<16x256xf32>
    %4 = arith.truncf %3 : vector<16x256xf32> to vector<16x256xbf16>
    %c0_5 = arith.constant 0 : index
    %c0_6 = arith.constant 0 : index
    %c126 = arith.constant 126 : index
    %5 = vector.load %arg2[%c0_5, %c0_6, %c126] : memref<1x16x128xf32, #tpu.memory_space<vmem>>, vector<1x16x2xf32>
    %6 = vector.shape_cast %5 : vector<1x16x2xf32> to vector<16x2xf32>
    %7 = arith.truncf %6 : vector<16x2xf32> to vector<16x2xbf16>
    %8 = vector.extract_strided_slice %4 {offsets = [0, 0], sizes = [16, 254], strides = [1, 1]} : vector<16x256xbf16> to vector<16x254xbf16>
    %9 = tpu.concatenate %7, %8 in 1 : vector<16x2xbf16>, vector<16x254xbf16> -> vector<16x256xbf16>
    %10 = vector.extract_strided_slice %4 {offsets = [0, 2], sizes = [16, 254], strides = [1, 1]} : vector<16x256xbf16> to vector<16x254xbf16>
    %c0_7 = arith.constant 0 : index
    %c0_8 = arith.constant 0 : index
    %c0_9 = arith.constant 0 : index
    %11 = vector.load %arg4[%c0_7, %c0_8, %c0_9] : memref<1x16x128xf32, #tpu.memory_space<vmem>>, vector<1x16x2xf32>
    %12 = vector.shape_cast %11 : vector<1x16x2xf32> to vector<16x2xf32>
    %13 = arith.truncf %12 : vector<16x2xf32> to vector<16x2xbf16>
    %14 = tpu.concatenate %10, %13 in 1 : vector<16x254xbf16>, vector<16x2xbf16> -> vector<16x256xbf16>
    %15 = tpu.concatenate %9, %4, %14 in 0 : vector<16x256xbf16>, vector<16x256xbf16>, vector<16x256xbf16> -> vector<48x256xbf16>
    %c0_10 = arith.constant 0 : index
    %c0_11 = arith.constant 0 : index
    %16 = vector.load %arg6[%c0_10, %c0_11] : memref<16x48xbf16, #tpu.memory_space<vmem>>, vector<16x48xbf16>
    %cst = arith.constant dense<0.000000e+00> : vector<16x256xf32>
    %17 = tpu.matmul %16, %15, %cst {dimension_numbers = #tpu.dot_dimension_numbers<[1], [0], [0], [1], [0, 0, 1, 1], [], []>} : vector<16x48xbf16>, vector<48x256xbf16>, vector<16x256xf32> -> vector<16x256xf32>
    %c0_12 = arith.constant 0 : index
    %c0_13 = arith.constant 0 : index
    %18 = vector.load %arg7[%c0_12, %c0_13] : memref<16x1xf32, #tpu.memory_space<vmem>>, vector<16x1xf32>
    %19 = vector.broadcast %18 : vector<16x1xf32> to vector<16x256xf32>
    %20 = arith.addf %17, %19 : vector<16x256xf32>
    %cst_14 = arith.constant 0.000000e+00 : f32
    %21 = vector.broadcast %cst_14 : f32 to vector<16x256xf32>
    %22 = arith.maximumf %20, %21 : vector<16x256xf32>
    %c0_15 = arith.constant 0 : index
    %c0_16 = arith.constant 0 : index
    %23 = vector.load %arg8[%c0_15, %c0_16] : memref<16x16xbf16, #tpu.memory_space<vmem>>, vector<16x16xbf16>
    %24 = arith.truncf %22 : vector<16x256xf32> to vector<16x256xbf16>
    %cst_17 = arith.constant dense<0.000000e+00> : vector<16x256xf32>
    %25 = tpu.matmul %23, %24, %cst_17 {dimension_numbers = #tpu.dot_dimension_numbers<[1], [0], [0], [1], [0, 0, 1, 1], [], []>} : vector<16x16xbf16>, vector<16x256xbf16>, vector<16x256xf32> -> vector<16x256xf32>
    %c0_18 = arith.constant 0 : index
    %c0_19 = arith.constant 0 : index
    %26 = vector.load %arg9[%c0_18, %c0_19] : memref<16x1xf32, #tpu.memory_space<vmem>>, vector<16x1xf32>
    %27 = vector.broadcast %26 : vector<16x1xf32> to vector<16x256xf32>
    %28 = arith.addf %25, %27 : vector<16x256xf32>
    %29 = arith.addf %1, %28 : vector<16x256xf32>
    %c0_20 = arith.constant 0 : index
    %c0_21 = arith.constant 0 : index
    %c0_22 = arith.constant 0 : index
    %30 = vector.load %arg5[%c0_20, %c0_21, %c0_22] : memref<1x1x256xf32, #tpu.memory_space<vmem>>, vector<1x1x256xf32>
    %31 = vector.shape_cast %30 : vector<1x1x256xf32> to vector<1x256xf32>
    %32 = vector.broadcast %31 : vector<1x256xf32> to vector<16x256xf32>
    %33 = arith.mulf %29, %32 : vector<16x256xf32>
    %c0_23 = arith.constant 0 : index
    %c0_24 = arith.constant 0 : index
    %c0_25 = arith.constant 0 : index
    %34 = vector.load %arg10[%c0_23, %c0_24, %c0_25] : memref<1x16x256xf32, #tpu.memory_space<vmem>>, vector<1x16x256xf32>
    %35 = vector.shape_cast %34 : vector<1x16x256xf32> to vector<16x256xf32>
    %36 = vector.shape_cast %33 : vector<16x256xf32> to vector<1x16x256xf32>
    tpu.vector_store %arg10[%c0_23, %c0_24, %c0_25], %36 {strides = array<i32>} : memref<1x16x256xf32, #tpu.memory_space<vmem>>, vector<1x16x256xf32>,
    return
  }
  func.func @transform_0(%arg0: i32, %arg1: i32) -> (i32, i32, i32) {
    %c1_i32 = arith.constant 1 : i32
    %0 = arith.addi %arg1, %c1_i32 : i32
    %c2_i32 = arith.constant 2 : i32
    %1 = arith.muli %0, %c2_i32 : i32
    %c1_i32_0 = arith.constant 1 : i32
    %2 = arith.subi %1, %c1_i32_0 : i32
    %c0_i32 = arith.constant 0 : i32
    %c0_i32_1 = arith.constant 0 : i32
    return %arg0, %c0_i32, %2 : i32, i32, i32
  }
  func.func @transform_1(%arg0: i32, %arg1: i32) -> (i32, i32, i32) {
    %c1_i32 = arith.constant 1 : i32
    %0 = arith.addi %arg1, %c1_i32 : i32
    %c0_i32 = arith.constant 0 : i32
    %c0_i32_0 = arith.constant 0 : i32
    return %arg0, %c0_i32, %0 : i32, i32, i32
  }
  func.func @transform_2(%arg0: i32, %arg1: i32) -> (i32, i32, i32) {
    %c2_i32 = arith.constant 2 : i32
    %0 = arith.addi %arg1, %c2_i32 : i32
    %c2_i32_0 = arith.constant 2 : i32
    %1 = arith.muli %0, %c2_i32_0 : i32
    %c0_i32 = arith.constant 0 : i32
    %c0_i32_1 = arith.constant 0 : i32
    return %arg0, %c0_i32, %1 : i32, i32, i32
  }
  func.func @transform_3(%arg0: i32, %arg1: i32) -> (i32, i32, i32) {
    %c0_i32 = arith.constant 0 : i32
    %c0_i32_0 = arith.constant 0 : i32
    return %arg0, %c0_i32, %arg1 : i32, i32, i32
  }
  func.func @transform_4(%arg0: i32, %arg1: i32) -> (i32, i32) {
    %c0_i32 = arith.constant 0 : i32
    %c0_i32_0 = arith.constant 0 : i32
    %c0_i32_1 = arith.constant 0 : i32
    return %c0_i32, %c0_i32_0 : i32, i32
  }
  func.func @transform_5(%arg0: i32, %arg1: i32) -> (i32, i32) {
    %c0_i32 = arith.constant 0 : i32
    %c0_i32_0 = arith.constant 0 : i32
    %c0_i32_1 = arith.constant 0 : i32
    return %c0_i32, %c0_i32_0 : i32, i32
  }
  func.func @transform_6(%arg0: i32, %arg1: i32) -> (i32, i32) {
    %c0_i32 = arith.constant 0 : i32
    %c0_i32_0 = arith.constant 0 : i32
    %c0_i32_1 = arith.constant 0 : i32
    return %c0_i32, %c0_i32_0 : i32, i32
  }
  func.func @transform_7(%arg0: i32, %arg1: i32) -> (i32, i32) {
    %c0_i32 = arith.constant 0 : i32
    %c0_i32_0 = arith.constant 0 : i32
    %c0_i32_1 = arith.constant 0 : i32
    return %c0_i32, %c0_i32_0 : i32, i32
  }
  func.func @transform_8(%arg0: i32, %arg1: i32) -> (i32, i32, i32) {
    %c0_i32 = arith.constant 0 : i32
    %c0_i32_0 = arith.constant 0 : i32
    return %arg0, %c0_i32, %arg1 : i32, i32, i32
  }
}

</mosaic_0001>

<llo_original>
// kernel: tpu_custom_call.1
$region0: #{tpu_custom_call.1}
  #allocation0 [shape = 'u32[]', space=smem, size = 0x4, offset = 0x4, fixed_abs, tag = 'smem constant byte address 0x4 - core index']
  #allocation1 [shape = 'u32[72,128]{1,0:T(1,128)}', space=vmem, size = 0x9000, scoped, tag = 'internal scratch']
  %s0 = inlined_call_operand.hbm [shape: f32[2,16,768], index: 0, kind: input, shape index: {}]
  %s1 = inlined_call_operand.hbm [shape: f32[2,16,768], index: 1, kind: input, shape index: {}]
  %s2 = inlined_call_operand.hbm [shape: f32[2,16,768], index: 2, kind: input, shape index: {}]
  %s3 = inlined_call_operand.vmem [shape: f32[2,1,256], index: 3, kind: input, shape index: {}]
  %s4 = inlined_call_operand.vmem [shape: bf16[16,48], index: 4, kind: input, shape index: {}]
  %s5 = inlined_call_operand.vmem [shape: f32[16,1], index: 5, kind: input, shape index: {}]
  %s6 = inlined_call_operand.vmem [shape: bf16[16,16], index: 6, kind: input, shape index: {}]
  %s7 = inlined_call_operand.vmem [shape: f32[16,1], index: 7, kind: input, shape index: {}]
  %s8 = inlined_call_operand.hbm [shape: f32[2,16,256], index: 8, kind: output, shape index: {}]
  %s9 = sld [smem:[#allocation0]]
  $region77: #{tpu_custom_call.1} parent=0
    _
  %s11 = ssub.s32 1, %s9
  %s12 = scalar_select 0, %s11, %s9
  $region1: #{tpu_custom_call.1} parent=0
    #allocation2 [shape = 'u8[16384]{0}', space=vmem, size = 0x4000, scoped, tag = 'input window, operand 0']
    #allocation3 [shape = 's32[2]{0}', space=sflag, size = 0x8, scoped, tag = 'scoped memory for tpu_custom_call.1']
    #allocation4 [shape = 's32[2]{0}', space=sflag, size = 0x8, scoped, tag = 'scoped memory for tpu_custom_call.1']
    #allocation5 [shape = 'u8[32768]{0}', space=vmem, size = 0x8000, scoped, tag = 'input window, operand 1']
    #allocation6 [shape = 's32[2]{0}', space=sflag, size = 0x8, scoped, tag = 'scoped memory for tpu_custom_call.1']
    #allocation7 [shape = 'u8[16384]{0}', space=vmem, size = 0x4000, scoped, tag = 'input window, operand 2']
    #allocation8 [shape = 'u8[32768]{0}', space=vmem, size = 0x8000, scoped, tag = 'output window, operand 0']
    %13 = vsyncpa [#allocation3], 0
    %s14 = scalar_lea.sflag [#allocation3], 1
    %15 = vsyncpa %s14, 0
    %16 = vsyncpa [#allocation6], 0
    %s17 = scalar_lea.sflag [#allocation6], 1
    %18 = vsyncpa %s17, 0
    %19 = vsyncpa [#allocation4], 0
    %s20 = scalar_lea.sflag [#allocation4], 1
    %21 = vsyncpa %s20, 0
    loop: start=0, step=1, limit=4
    $region2: #{tpu_custom_call.1} parent=1 // loop_pre_header
      _
    $region3: #{tpu_custom_call.1} parent=1 // loop_header
      %s23 = sphi 0, %s27
      %p24 = scmp.ge.s32.totalorder %s23, 4
      %s30 = sphi 0, %s42
      %s31 = sphi 0, %s38
      %s32 = sphi 0, %s30
      %s33 = sphi 0, %s31
      %s34 = sphi 0, %s32
      %s35 = sphi 0, %s33
      %s53 = sphi 0, %s55
      %s56 = sphi 0, %s53
      %s57 = sphi 0, %s56
      %s73 = sphi 0, %s57
      %s83 = sphi 0, %s85
      %s86 = sphi 0, %s83
      %s87 = sphi 0, %s86
      %s103 = sphi 0, %s87
      %s115 = sphi 0, %s117
      %s118 = sphi 0, %s115
      %s119 = sphi 0, %s118
      %s135 = sphi 0, %s119
      %s143 = sphi 0, %s145
      %s146 = sphi 0, %s143
      %s147 = sphi 0, %s146
      %s163 = sphi 0, %s147
      %s167 = sphi 0, %s167
      %s169 = sphi 0, %s167
      %s170 = sphi 0, %s169
      %s184 = sphi 0, %s170
      %s188 = sphi 0, %s188
      %s190 = sphi 0, %s188
      %s191 = sphi 0, %s190
      %s205 = sphi 0, %s191
      %s209 = sphi 0, %s209
      %s211 = sphi 0, %s209
      %s212 = sphi 0, %s211
      %s226 = sphi 0, %s212
      %s230 = sphi 0, %s230
      %s232 = sphi 0, %s230
      %s233 = sphi 0, %s232
      %s247 = sphi 0, %s233
      %s255 = sphi 0, %s257
      %s258 = sphi 0, %s255
      %s259 = sphi 0, %s258
      %s275 = sphi 0, %s259
    $region4: #{tpu_custom_call.1} parent=1 // loop_header_branch
      %26 = sbr.rel (%p24) target = $region8
    $region5: #{tpu_custom_call.1} parent=1 // loop_body
      %s28 = ssub.s32 %s23, 1
      %s29 = ssub.s32 %s23, 2
      %s36 = sadd.s32 1, %s31
      %p37 = scmp.ge.s32.totalorder %s36, 1
      %s38 = scalar_select %p37, 0, %s36
      %s39 = sadd.s32 1, %s30
      %s40 = scalar_select %p37, %s39, %s30
      %p41 = scmp.ge.s32.totalorder %s40, 2
      %s42 = scalar_select %p41, 0, %s40
      %s43 = sadd.s32 %s31, 1
      %s44 = smul.u32 %s43, 2
      %s45 = ssub.s32 %s44, 1
      %s46 = sadd.s32 %s38, 1
      %s47 = smul.u32 %s46, 2
      %s48 = ssub.s32 %s47, 1
      %s49 = ssub.s32 %s30, %s42
      %s50 = ssub.s32 %s45, %s48
      %s51 = sor.u32 %s49, %s50
      %p52 = scmp.eq.s32.totalorder %s51, 0
      %s54 = sadd.s32 %s53, 1
      %s55 = scalar_select %p52, %s53, %s54
      %p58 = pneg %p52
      %p59 = scmp.eq.s32.totalorder %s23, 1
      %p60 = por %p58, %p59
      %p61 = scmp.ne.s32.totalorder %s53, %s56
      %p62 = scmp.eq.s32.totalorder %s23, 0
      %p63 = por %p61, %p62
      %p64 = scmp.ne.s32.totalorder %s53, %s56
      %p65 = scmp.eq.s32.totalorder %s28, 1
      %p66 = por %p64, %p65
      %p67 = scmp.ne.s32.totalorder %s56, %s57
      %p68 = scmp.eq.s32.totalorder %s28, 0
      %p69 = por %p67, %p68
      %p70 = scmp.ne.s32.totalorder %s56, %s57
      %p71 = scmp.eq.s32.totalorder %s29, 1
      %p72 = por %p70, %p71
      %p74 = scmp.ne.s32.totalorder %s57, %s73
      %p75 = scmp.eq.s32.totalorder %s29, 0
      %p76 = por %p74, %p75
      %s77 = sadd.s32 %s31, 1
      %s78 = sadd.s32 %s38, 1
      %s79 = ssub.s32 %s30, %s42
      %s80 = ssub.s32 %s77, %s78
      %s81 = sor.u32 %s79, %s80
      %p82 = scmp.eq.s32.totalorder %s81, 0
      %s84 = sadd.s32 %s83, 1
      %s85 = scalar_select %p82, %s83, %s84
      %p88 = pneg %p82
      %p89 = scmp.eq.s32.totalorder %s23, 1
      %p90 = por %p88, %p89
      %p91 = scmp.ne.s32.totalorder %s83, %s86
      %p92 = scmp.eq.s32.totalorder %s23, 0
      %p93 = por %p91, %p92
      %p94 = scmp.ne.s32.totalorder %s83, %s86
      %p95 = scmp.eq.s32.totalorder %s28, 1
      %p96 = por %p94, %p95
      %p97 = scmp.ne.s32.totalorder %s86, %s87
      %p98 = scmp.eq.s32.totalorder %s28, 0
      %p99 = por %p97, %p98
      %p100 = scmp.ne.s32.totalorder %s86, %s87
      %p101 = scmp.eq.s32.totalorder %s29, 1
      %p102 = por %p100, %p101
      %p104 = scmp.ne.s32.totalorder %s87, %s103
      %p105 = scmp.eq.s32.totalorder %s29, 0
      %p106 = por %p104, %p105
      %s107 = sadd.s32 %s31, 2
      %s108 = smul.u32 %s107, 2
      %s109 = sadd.s32 %s38, 2
      %s110 = smul.u32 %s109, 2
      %s111 = ssub.s32 %s30, %s42
      %s112 = ssub.s32 %s108, %s110
      %s113 = sor.u32 %s111, %s112
      %p114 = scmp.eq.s32.totalorder %s113, 0
      %s116 = sadd.s32 %s115, 1
      %s117 = scalar_select %p114, %s115, %s116
      %p120 = pneg %p114
      %p121 = scmp.eq.s32.totalorder %s23, 1
      %p122 = por %p120, %p121
      %p123 = scmp.ne.s32.totalorder %s115, %s118
      %p124 = scmp.eq.s32.totalorder %s23, 0
      %p125 = por %p123, %p124
      %p126 = scmp.ne.s32.totalorder %s115, %s118
      %p127 = scmp.eq.s32.totalorder %s28, 1
      %p128 = por %p126, %p127
      %p129 = scmp.ne.s32.totalorder %s118, %s119
      %p130 = scmp.eq.s32.totalorder %s28, 0
      %p131 = por %p129, %p130
      %p132 = scmp.ne.s32.totalorder %s118, %s119
      %p133 = scmp.eq.s32.totalorder %s29, 1
      %p134 = por %p132, %p133
      %p136 = scmp.ne.s32.totalorder %s119, %s135
      %p137 = scmp.eq.s32.totalorder %s29, 0
      %p138 = por %p136, %p137
      %s139 = ssub.s32 %s30, %s42
      %s140 = ssub.s32 %s31, %s38
      %s141 = sor.u32 %s139, %s140
      %p142 = scmp.eq.s32.totalorder %s141, 0
      %s144 = sadd.s32 %s143, 1
      %s145 = scalar_select %p142, %s143, %s144
      %p148 = pneg %p142
      %p149 = scmp.eq.s32.totalorder %s23, 1
      %p150 = por %p148, %p149
      %p151 = scmp.ne.s32.totalorder %s143, %s146
      %p152 = scmp.eq.s32.totalorder %s23, 0
      %p153 = por %p151, %p152
      %p154 = scmp.ne.s32.totalorder %s143, %s146
      %p155 = scmp.eq.s32.totalorder %s28, 1
      %p156 = por %p154, %p155
      %p157 = scmp.ne.s32.totalorder %s146, %s147
      %p158 = scmp.eq.s32.totalorder %s28, 0
      %p159 = por %p157, %p158
      %p160 = scmp.ne.s32.totalorder %s146, %s147
      %p161 = scmp.eq.s32.totalorder %s29, 1
      %p162 = por %p160, %p161
      %p164 = scmp.ne.s32.totalorder %s147, %s163
      %p165 = scmp.eq.s32.totalorder %s29, 0
      %p166 = por %p164, %p165
      %s168 = sadd.s32 %s167, 1
      %p171 = scmp.eq.s32.totalorder %s23, 1
      %p172 = scmp.ne.s32.totalorder %s167, %s169
      %p173 = scmp.eq.s32.totalorder %s23, 0
      %p174 = por %p172, %p173
      %p175 = scmp.ne.s32.totalorder %s167, %s169
      %p176 = scmp.eq.s32.totalorder %s28, 1
      %p177 = por %p175, %p176
      %p178 = scmp.ne.s32.totalorder %s169, %s170
      %p179 = scmp.eq.s32.totalorder %s28, 0
      %p180 = por %p178, %p179
      %p181 = scmp.ne.s32.totalorder %s169, %s170
      %p182 = scmp.eq.s32.totalorder %s29, 1
      %p183 = por %p181, %p182
      %p185 = scmp.ne.s32.totalorder %s170, %s184
      %p186 = scmp.eq.s32.totalorder %s29, 0
      %p187 = por %p185, %p186
      %s189 = sadd.s32 %s188, 1
      %p192 = scmp.eq.s32.totalorder %s23, 1
      %p193 = scmp.ne.s32.totalorder %s188, %s190
      %p194 = scmp.eq.s32.totalorder %s23, 0
      %p195 = por %p193, %p194
      %p196 = scmp.ne.s32.totalorder %s188, %s190
      %p197 = scmp.eq.s32.totalorder %s28, 1
      %p198 = por %p196, %p197
      %p199 = scmp.ne.s32.totalorder %s190, %s191
      %p200 = scmp.eq.s32.totalorder %s28, 0
      %p201 = por %p199, %p200
      %p202 = scmp.ne.s32.totalorder %s190, %s191
      %p203 = scmp.eq.s32.totalorder %s29, 1
      %p204 = por %p202, %p203
      %p206 = scmp.ne.s32.totalorder %s191, %s205
      %p207 = scmp.eq.s32.totalorder %s29, 0
      %p208 = por %p206, %p207
      %s210 = sadd.s32 %s209, 1
      %p213 = scmp.eq.s32.totalorder %s23, 1
      %p214 = scmp.ne.s32.totalorder %s209, %s211
      %p215 = scmp.eq.s32.totalorder %s23, 0
      %p216 = por %p214, %p215
      %p217 = scmp.ne.s32.totalorder %s209, %s211
      %p218 = scmp.eq.s32.totalorder %s28, 1
      %p219 = por %p217, %p218
      %p220 = scmp.ne.s32.totalorder %s211, %s212
      %p221 = scmp.eq.s32.totalorder %s28, 0
      %p222 = por %p220, %p221
      %p223 = scmp.ne.s32.totalorder %s211, %s212
      %p224 = scmp.eq.s32.totalorder %s29, 1
      %p225 = por %p223, %p224
      %p227 = scmp.ne.s32.totalorder %s212, %s226
      %p228 = scmp.eq.s32.totalorder %s29, 0
      %p229 = por %p227, %p228
      %s231 = sadd.s32 %s230, 1
      %p234 = scmp.eq.s32.totalorder %s23, 1
      %p235 = scmp.ne.s32.totalorder %s230, %s232
      %p236 = scmp.eq.s32.totalorder %s23, 0
      %p237 = por %p235, %p236
      %p238 = scmp.ne.s32.totalorder %s230, %s232
      %p239 = scmp.eq.s32.totalorder %s28, 1
      %p240 = por %p238, %p239
      %p241 = scmp.ne.s32.totalorder %s232, %s233
      %p242 = scmp.eq.s32.totalorder %s28, 0
      %p243 = por %p241, %p242
      %p244 = scmp.ne.s32.totalorder %s232, %s233
      %p245 = scmp.eq.s32.totalorder %s29, 1
      %p246 = por %p244, %p245
      %p248 = scmp.ne.s32.totalorder %s233, %s247
      %p249 = scmp.eq.s32.totalorder %s29, 0
      %p250 = por %p248, %p249
      %s251 = ssub.s32 %s30, %s42
      %s252 = ssub.s32 %s31, %s38
      %s253 = sor.u32 %s251, %s252
      %p254 = scmp.eq.s32.totalorder %s253, 0
      %s256 = sadd.s32 %s255, 1
      %s257 = scalar_select %p254, %s255, %s256
      %p260 = pneg %p254
      %p261 = scmp.eq.s32.totalorder %s23, 1
      %p262 = por %p260, %p261
      %p263 = scmp.ne.s32.totalorder %s255, %s258
      %p264 = scmp.eq.s32.totalorder %s23, 0
      %p265 = por %p263, %p264
      %p266 = scmp.ne.s32.totalorder %s255, %s258
      %p267 = scmp.eq.s32.totalorder %s28, 1
      %p268 = por %p266, %p267
      %p269 = scmp.ne.s32.totalorder %s258, %s259
      %p270 = scmp.eq.s32.totalorder %s28, 0
      %p271 = por %p269, %p270
      %p272 = scmp.ne.s32.totalorder %s258, %s259
      %p273 = scmp.eq.s32.totalorder %s29, 1
      %p274 = por %p272, %p273
      %p276 = scmp.ne.s32.totalorder %s259, %s275
      %p277 = scmp.eq.s32.totalorder %s29, 0
      %p278 = por %p276, %p277
      %p279 = scmp.le.s32.totalorder 1, %s23
      %p280 = scmp.lt.s32.totalorder %s23, 3
      %p281 = pnand %p279, %p280
      %p282 = pneg %p281
      // Predicated region
      $region9: #{tpu_custom_call.1} parent=5 // pred_check
        _
      $region10: #{tpu_custom_call.1} parent=5 // pred_check_branch
        %284 = sbr.rel (%p281) target = $region12
      $region11: #{tpu_custom_call.1} parent=5 // pred_region
        %s285 = ssub.s32 %s23, 1
        // Predicated region
        $region13: #{tpu_custom_call.1} parent=11 // pred_check
          %p286 = pneg %p180
        $region14: #{tpu_custom_call.1} parent=11 // pred_check_branch
          %288 = sbr.rel (%p286) target = $region16
        $region15: #{tpu_custom_call.1} parent=11 // pred_region
          _
        $region16: #{tpu_custom_call.1} parent=11 // pred_fallthru
          _
        // Predicated region
        $region17: #{tpu_custom_call.1} parent=11 // pred_check
          %p289 = pneg %p201
        $region18: #{tpu_custom_call.1} parent=11 // pred_check_branch
          %291 = sbr.rel (%p289) target = $region20
        $region19: #{tpu_custom_call.1} parent=11 // pred_region
          _
        $region20: #{tpu_custom_call.1} parent=11 // pred_fallthru
          _
        // Predicated region
        $region21: #{tpu_custom_call.1} parent=11 // pred_check
          %p292 = pneg %p222
        $region22: #{tpu_custom_call.1} parent=11 // pred_check_branch
          %294 = sbr.rel (%p292) target = $region24
        $region23: #{tpu_custom_call.1} parent=11 // pred_region
          _
        $region24: #{tpu_custom_call.1} parent=11 // pred_fallthru
          _
        // Predicated region
        $region25: #{tpu_custom_call.1} parent=11 // pred_check
          %p295 = pneg %p243
        $region26: #{tpu_custom_call.1} parent=11 // pred_check_branch
          %297 = sbr.rel (%p295) target = $region28
        $region27: #{tpu_custom_call.1} parent=11 // pred_region
          _
        $region28: #{tpu_custom_call.1} parent=11 // pred_fallthru
          _
      $region12: #{tpu_custom_call.1} parent=5 // pred_fallthru
        _
      %p298 = scmp.lt.s32.totalorder %s23, 2
      // Predicated region
      $region29: #{tpu_custom_call.1} parent=5 // pred_check
        %p299 = pneg %p298
      $region30: #{tpu_custom_call.1} parent=5 // pred_check_branch
        %301 = sbr.rel (%p299) target = $region32
      $region31: #{tpu_custom_call.1} parent=5 // pred_region
        // Predicated region
        $region33: #{tpu_custom_call.1} parent=31 // pred_check
          %p302 = pneg %p63
        $region34: #{tpu_custom_call.1} parent=31 // pred_check_branch
          %304 = sbr.rel (%p302) target = $region36
        $region35: #{tpu_custom_call.1} parent=31 // pred_region
          %s305 = sand.u32 %s53, 1
          %s306 = scalar_lea.sflag [#allocation3], %s305
          %s307 = sand.u32 %s53, 1
          %s308 = smul.addr %s307, 16
          %s309 = scalar_lea.vmem [#allocation2], %s308
          %s310 = sadd.s32 %s31, 1
          %s311 = smul.u32 %s310, 2
          %s312 = ssub.s32 %s311, 1
          %314 = vsyncadd %s306, 0
          %s315 = smul.addr %s30, 12
          %s316 = sadd.s32 %s312, %s315
          %s317 = smul.addr %s316, 8
          %s318 = scalar_lea.hbm %s0, %s317
          %s319 = sshll.u32 %s318, 4
          %s320 = int_to_ptr.hbm [resolvable:$true] %s319
          %s321 = sshll.u32 %s309, 4
          %s322 = int_to_ptr.vmem [resolvable:$true] %s321
          %327 = dma.hbm_to_vmem [thread:$0]  %s320, 256, %s322, %s306, 768, 128, 8
        $region36: #{tpu_custom_call.1} parent=31 // pred_fallthru
          _
        // Predicated region
        $region37: #{tpu_custom_call.1} parent=31 // pred_check
          %p328 = pneg %p93
        $region38: #{tpu_custom_call.1} parent=31 // pred_check_branch
          %330 = sbr.rel (%p328) target = $region40
        $region39: #{tpu_custom_call.1} parent=31 // pred_region
          %s331 = sand.u32 %s23, 1
          %s332 = scalar_lea.sflag [#allocation6], %s331
          %s333 = sand.u32 %s83, 1
          %s334 = smul.addr %s333, 32
          %s335 = scalar_lea.vmem [#allocation5], %s334
          %s336 = sadd.s32 %s31, 1
          %s337 = smul.u32 2, %s336
          %339 = vsyncadd %s332, 0
          %s340 = smul.addr %s30, 12
          %s341 = sadd.s32 %s337, %s340
          %s342 = smul.addr %s341, 8
          %s343 = scalar_lea.hbm %s1, %s342
          %s344 = sshll.u32 %s343, 4
          %s345 = int_to_ptr.hbm [resolvable:$true] %s344
          %s346 = sshll.u32 %s335, 4
          %s347 = int_to_ptr.vmem [resolvable:$true] %s346
          %352 = dma.hbm_to_vmem [thread:$0]  %s345, 512, %s347, %s332, 768, 256, 16
        $region40: #{tpu_custom_call.1} parent=31 // pred_fallthru
          _
        // Predicated region
        $region41: #{tpu_custom_call.1} parent=31 // pred_check
          %p353 = pneg %p125
        $region42: #{tpu_custom_call.1} parent=31 // pred_check_branch
          %355 = sbr.rel (%p353) target = $region44
        $region43: #{tpu_custom_call.1} parent=31 // pred_region
          %s356 = sand.u32 %s23, 1
          %s357 = scalar_lea.sflag [#allocation6], %s356
          %s358 = sand.u32 %s115, 1
          %s359 = smul.addr %s358, 16
          %s360 = scalar_lea.vmem [#allocation7], %s359
          %s361 = sadd.s32 %s31, 2
          %s362 = smul.u32 %s361, 2
          %364 = vsyncadd %s357, 0
          %s365 = smul.addr %s30, 12
          %s366 = sadd.s32 %s362, %s365
          %s367 = smul.addr %s366, 8
          %s368 = scalar_lea.hbm %s2, %s367
          %s369 = sshll.u32 %s368, 4
          %s370 = int_to_ptr.hbm [resolvable:$true] %s369
          %s371 = sshll.u32 %s360, 4
          %s372 = int_to_ptr.vmem [resolvable:$true] %s371
          %377 = dma.hbm_to_vmem [thread:$0]  %s370, 256, %s372, %s357, 768, 128, 8
        $region44: #{tpu_custom_call.1} parent=31 // pred_fallthru
          _
        // Predicated region
        $region45: #{tpu_custom_call.1} parent=31 // pred_check
          %p378 = pneg %p153
        $region46: #{tpu_custom_call.1} parent=31 // pred_check_branch
          %380 = sbr.rel (%p378) target = $region48
        $region47: #{tpu_custom_call.1} parent=31 // pred_region
          %s381 = smul.u32 2, %s31
          %p382 = scmp.lt.s32.totalorder %s30, 1
          %s383 = scalar_select %p382, %s30, 1
          %p384 = scmp.lt.s32.totalorder %s381, 1
          %s385 = scalar_select %p384, %s381, 1
          %s386 = smul.addr %s383, 2
          %s387 = sadd.s32 %s385, %s386
          %s388 = scalar_lea.vmem %s3, %s387
          %s389 = smul.u32 2, %s31
        $region48: #{tpu_custom_call.1} parent=31 // pred_fallthru
          _
      $region32: #{tpu_custom_call.1} parent=5 // pred_fallthru
        _
      %p390 = scmp.le.s32.totalorder 1, %s23
      %p391 = scmp.lt.s32.totalorder %s23, 3
      %p392 = pnand %p390, %p391
      %p393 = pneg %p392
      // Predicated region
      $region49: #{tpu_custom_call.1} parent=5 // pred_check
        _
      $region50: #{tpu_custom_call.1} parent=5 // pred_check_branch
        %395 = sbr.rel (%p392) target = $region52
      $region51: #{tpu_custom_call.1} parent=5 // pred_region
        %s396 = ssub.s32 %s23, 1
        %s397 = sand.u32 %s56, 1
        %s398 = scalar_lea.sflag [#allocation3], %s397
        %s399 = sand.u32 %s56, 1
        %s400 = smul.addr %s399, 16
        %s401 = scalar_lea.vmem [#allocation2], %s400
        // Predicated region
        $region53: #{tpu_custom_call.1} parent=51 // pred_check
          %p402 = pneg %p69
        $region54: #{tpu_custom_call.1} parent=51 // pred_check_branch
          %404 = sbr.rel (%p402) target = $region56
        $region55: #{tpu_custom_call.1} parent=51 // pred_region
          %406 = dma.done %s398, 256
        $region56: #{tpu_custom_call.1} parent=51 // pred_fallthru
          _
        %s407 = sand.u32 %s28, 1
        %s408 = scalar_lea.sflag [#allocation6], %s407
        %s409 = sand.u32 %s86, 1
        %s410 = smul.addr %s409, 32
        %s411 = scalar_lea.vmem [#allocation5], %s410
        // Predicated region
        $region57: #{tpu_custom_call.1} parent=51 // pred_check
          %p412 = pneg %p99
        $region58: #{tpu_custom_call.1} parent=51 // pred_check_branch
          %414 = sbr.rel (%p412) target = $region60
        $region59: #{tpu_custom_call.1} parent=51 // pred_region
          %416 = dma.done %s408, 512
        $region60: #{tpu_custom_call.1} parent=51 // pred_fallthru
          _
        %s417 = sand.u32 %s28, 1
        %s418 = scalar_lea.sflag [#allocation6], %s417
        %s419 = sand.u32 %s118, 1
        %s420 = smul.addr %s419, 16
        %s421 = scalar_lea.vmem [#allocation7], %s420
        // Predicated region
        $region61: #{tpu_custom_call.1} parent=51 // pred_check
          %p422 = pneg %p131
        $region62: #{tpu_custom_call.1} parent=51 // pred_check_branch
          %424 = sbr.rel (%p422) target = $region64
        $region63: #{tpu_custom_call.1} parent=51 // pred_region
          %426 = dma.done %s418, 256
        $region64: #{tpu_custom_call.1} parent=51 // pred_fallthru
          _
        %s427 = sand.u32 %s56, 1
        %s428 = scalar_lea.sflag [#allocation3], %s427
        %s429 = sand.u32 %s56, 1
        %s430 = smul.addr %s429, 16
        %s431 = scalar_lea.vmem [#allocation2], %s430
        %p432 = pneg %p69
        %p433 = pneg %p66
        %s434 = sand.u32 %s28, 1
        %s435 = scalar_lea.sflag [#allocation6], %s434
        %s436 = sand.u32 %s86, 1
        %s437 = smul.addr %s436, 32
        %s438 = scalar_lea.vmem [#allocation5], %s437
        %p439 = pneg %p99
        %p440 = pneg %p96
        %s441 = sand.u32 %s28, 1
        %s442 = scalar_lea.sflag [#allocation6], %s441
        %s443 = sand.u32 %s118, 1
        %s444 = smul.addr %s443, 16
        %s445 = scalar_lea.vmem [#allocation7], %s444
        %p446 = pneg %p131
        %p447 = pneg %p128
        %s448 = smul.u32 2, %s33
        %p449 = scmp.lt.s32.totalorder %s32, 1
        %s450 = scalar_select %p449, %s32, 1
        %p451 = scmp.lt.s32.totalorder %s448, 1
        %s452 = scalar_select %p451, %s448, 1
        %s453 = smul.addr %s450, 2
        %s454 = sadd.s32 %s452, %s453
        %s455 = scalar_lea.vmem %s3, %s454
        %p456 = pneg %p159
        %p457 = pneg %p156
        %p458 = pneg %p180
        %p459 = pneg %p177
        %p460 = pneg %p201
        %p461 = pneg %p198
        %p462 = pneg %p222
        %p463 = pneg %p219
        %p464 = pneg %p243
        %p465 = pneg %p240
        %p466 = pneg %p271
        %p467 = pneg %p268
        %s468 = sand.u32 %s258, 1
        %s469 = scalar_lea.sflag [#allocation4], %s468
        %s470 = sand.u32 %s258, 1
        %s471 = smul.addr %s470, 32
        %s472 = scalar_lea.vmem [#allocation8], %s471
        %s473 = sadd.s32 %s33, 1
        %s474 = smul.u32 %s473, 2
        %s475 = ssub.s32 %s474, 1
        %s476 = sadd.s32 %s33, 1
        %s477 = smul.u32 2, %s476
        %s478 = sadd.s32 %s33, 2
        %s479 = smul.u32 %s478, 2
        %s480 = smul.u32 2, %s33
        %p481 = scmp.lt.s32.totalorder %s32, 1
        %s482 = scalar_select %p481, %s32, 1
        %p483 = scmp.lt.s32.totalorder %s480, 1
        %s484 = scalar_select %p483, %s480, 1
        %s485 = smul.addr %s482, 2
        %s486 = sadd.s32 %s484, %s485
        %s487 = scalar_lea.vmem %s3, %s486
        %s488 = smul.u32 2, %s33
        %s489 = smul.u32 2, %s33
        %v491 = vld [vmem:[%s411] sm:$0xff]
        %v492 = vld [vmem:[%s411 + $0x8] sm:$0xff]
        %v493 = vld [vmem:[%s411 + $0x10] sm:$0xff]
        %v494 = vld [vmem:[%s411 + $0x18] sm:$0xff]
        %v495 = vpack.c.bf16 %v492, %v491
        %v496 = vpack.c.bf16 %v494, %v493
        %v497 = vld [vmem:[%s401] sm:$0xff]
        %v498 = vld [vmem:[%s401 + $0x8] sm:$0xff]
        %v499 = vpack.c.bf16 %v497, %v497
        %v500 = vpack.c.bf16 %v498, %v498
        %v503 = vunpack.c.l.b16 %v499
        %v504 = vunpack.c.l.b16 %v500
        %v505 = vpack.c.b16 %v504, %v503
        %506 = vrot.lane.b32.xlu0 %v505, 2
        %v507 = vpop.permute.xlu0 %506
        %v510 = vunpack.c.l.b16 %v495
        %v511 = vunpack.c.h.b16 %v495
        %v512 = vunpack.c.l.b16 %v496
        %v513 = vunpack.c.h.b16 %v496
        %v514 = vpack.c.b16 %v512, %v510
        %v515 = vpack.c.b16 %v513, %v511
        %516 = vrot.lane.b32.xlu0 %v514, 2
        %v517 = vpop.permute.xlu0 %516
        %518 = vrot.lane.b32.xlu0 %v515, 2
        %v519 = vpop.permute.xlu0 %518
        %vm520 = vcmask 15360
        %v521 = vsel %vm520, %v517, %v519
        %vm523 = vcmask 15360
        %v526 = vsel %vm523, %v507, %v517
        %v528 = vld [vmem:[%s421] sm:$0xff]
        %v529 = vld [vmem:[%s421 + $0x8] sm:$0xff]
        %v530 = vpack.c.bf16 %v528, %v528
        %v531 = vpack.c.bf16 %v529, %v529
        %532 = vrot.lane.b32.xlu0 %v514, 126
        %v533 = vpop.permute.xlu0 %532
        %534 = vrot.lane.b32.xlu0 %v515, 126
        %v535 = vpop.permute.xlu0 %534
        %vm536 = vcmask 1031168
        %v537 = vsel %vm536, %v533, %v535
        %v541 = vunpack.c.l.b16 %v530
        %v542 = vunpack.c.l.b16 %v531
        %v543 = vpack.c.b16 %v542, %v541
        %544 = vrot.lane.b32.xlu0 %v543, 126
        %v545 = vpop.permute.xlu0 %544
        %vm546 = vcmask 1031168
        %v549 = vsel %vm546, %v535, %v545
        %v553 = vld [vmem:[%s4] sm:$0xf]
        %v554 = vld [vmem:[%s4 + $0x4] sm:$0xf]
        %v555 = vld [vmem:[%s5] sm:$0xff]
        %v556 = vld [vmem:[%s5 + $0x8] sm:$0xff]
        %558 = vset.pattern.permute.xlu0 0
        %559 = vperm.xlu0 %558, %v555
        %v560 = vpop.permute.xlu0 %559
        %563 = vset.pattern.permute.xlu0 0
        %564 = vperm.xlu0 %563, %v556
        %v565 = vpop.permute.xlu0 %564
        %v569 = vunpack.c.l.b16 %v553
        %v570 = vunpack.c.l.b16 %v554
        %v571 = vpack.c.b16 %v570, %v569
        %vm572 = vcmask 392192
        %v574 = vsel %vm572, %v571, 0
        %576 = vmatpush.bf16.msra.mxu0 0
        %577 = vmatpush.bf16.msra.mxu0 0
        %578 = vmatpush.bf16.msra.mxu0 0
        %579 = vmatpush.bf16.msra.mxu0 0
        %580 = vmatpush.bf16.msra.mxu0 0
        %581 = vmatpush.bf16.msra.mxu0 %v537
        %582 = vmatpush.bf16.msra.mxu0 %v514
        %583 = vmatpush.bf16.msra.mxu0 %v526
        %584 = vmatmul.bf16.gmra.mxu0 %v574
        %v585 = vpop.f32.mrf.mxu0
        %v586 = vadd.f32 %v560, %v585
        %v587 = vpop.f32.mrf.mxu0
        %v588 = vadd.f32 %v565, %v587
        %589 = vdwg.mxu0
        %590 = vmatpush.bf16.msra.mxu0 0
        %591 = vmatpush.bf16.msra.mxu0 0
        %592 = vmatpush.bf16.msra.mxu0 0
        %593 = vmatpush.bf16.msra.mxu0 0
        %594 = vmatpush.bf16.msra.mxu0 0
        %595 = vmatpush.bf16.msra.mxu0 %v549
        %596 = vmatpush.bf16.msra.mxu0 %v515
        %597 = vmatpush.bf16.msra.mxu0 %v521
        %598 = vmatmul.bf16.gmra.mxu0 %v574
        %v599 = vpop.f32.mrf.mxu0
        %v600 = vadd.f32 %v560, %v599
        %v601 = vpop.f32.mrf.mxu0
        %v602 = vadd.f32 %v565, %v601
        %603 = vdwg.mxu0
        %v604 = vmax.f32 %v586, 0.0
        %v605 = vmax.f32 %v600, 0.0
        %v606 = vmax.f32 %v588, 0.0
        %v607 = vmax.f32 %v602, 0.0
        %v608 = vld [vmem:[%s6] sm:$0xf]
        %v609 = vld [vmem:[%s6 + $0x4] sm:$0xf]
        %v610 = vpack.c.bf16 %v606, %v604
        %v611 = vpack.c.bf16 %v607, %v605
        %v612 = vld [vmem:[%s7] sm:$0xff]
        %v613 = vld [vmem:[%s7 + $0x8] sm:$0xff]
        %615 = vset.pattern.permute.xlu0 0
        %616 = vperm.xlu0 %615, %v612
        %v617 = vpop.permute.xlu0 %616
        %620 = vset.pattern.permute.xlu0 0
        %621 = vperm.xlu0 %620, %v613
        %v622 = vpop.permute.xlu0 %621
        %v626 = vunpack.c.l.b16 %v608
        %v627 = vunpack.c.l.b16 %v609
        %v628 = vpack.c.b16 %v627, %v626
        %vm629 = vcmask 130048
        %v631 = vsel %vm629, %v628, 0
        %633 = vmatpush.bf16.msra.mxu0 0
        %634 = vmatpush.bf16.msra.mxu0 0
        %635 = vmatpush.bf16.msra.mxu0 0
        %636 = vmatpush.bf16.msra.mxu0 0
        %637 = vmatpush.bf16.msra.mxu0 0
        %638 = vmatpush.bf16.msra.mxu0 0
        %639 = vmatpush.bf16.msra.mxu0 0
        %640 = vmatpush.bf16.msra.mxu0 %v610
        %641 = vmatmul.bf16.gmra.mxu0 %v631
        %v642 = vpop.f32.mrf.mxu0
        %v643 = vadd.f32 %v617, %v642
        %v644 = vpop.f32.mrf.mxu0
        %v645 = vadd.f32 %v622, %v644
        %646 = vdwg.mxu0
        %647 = vmatpush.bf16.msra.mxu0 0
        %648 = vmatpush.bf16.msra.mxu0 0
        %649 = vmatpush.bf16.msra.mxu0 0
        %650 = vmatpush.bf16.msra.mxu0 0
        %651 = vmatpush.bf16.msra.mxu0 0
        %652 = vmatpush.bf16.msra.mxu0 0
        %653 = vmatpush.bf16.msra.mxu0 0
        %654 = vmatpush.bf16.msra.mxu0 %v611
        %655 = vmatmul.bf16.gmra.mxu0 %v631
        %v656 = vpop.f32.mrf.mxu0
        %v657 = vadd.f32 %v617, %v656
        %v658 = vpop.f32.mrf.mxu0
        %v659 = vadd.f32 %v622, %v658
        %660 = vdwg.mxu0
        %v661 = vadd.f32 %v491, %v643
        %v662 = vadd.f32 %v492, %v657
        %v663 = vadd.f32 %v493, %v645
        %v664 = vadd.f32 %v494, %v659
        %v665 = vld [vmem:[%s487] sm:$0x3]
        %v667 = vperm.slane %v665, 0
        %v668 = vperm.slane %v665, 1
        %v671 = vmul.f32 %v661, %v667
        %v672 = vmul.f32 %v662, %v668
        %v673 = vmul.f32 %v663, %v667
        %v674 = vmul.f32 %v664, %v668
        %675 = vst [vmem:[%s472] sm:$0xff] %v671
        %676 = vst [vmem:[%s472 + $0x8] sm:$0xff] %v672
        %677 = vst [vmem:[%s472 + $0x10] sm:$0xff] %v673
        %678 = vst [vmem:[%s472 + $0x18] sm:$0xff] %v674
        %s679 = sand.u32 %s258, 1
        %s680 = scalar_lea.sflag [#allocation4], %s679
        %s681 = sand.u32 %s258, 1
        %s682 = smul.addr %s681, 32
        %s683 = scalar_lea.vmem [#allocation8], %s682
        // Predicated region
        $region65: #{tpu_custom_call.1} parent=51 // pred_check
          %p684 = pneg %p268
        $region66: #{tpu_custom_call.1} parent=51 // pred_check_branch
          %686 = sbr.rel (%p684) target = $region68
        $region67: #{tpu_custom_call.1} parent=51 // pred_region
          %s687 = smul.u32 2, %s33
          %689 = vsyncadd %s680, 0
          %s690 = smul.addr %s32, 4
          %s691 = sadd.s32 %s687, %s690
          %s692 = smul.addr %s691, 8
          %s693 = scalar_lea.hbm %s8, %s692
          %s694 = sshll.u32 %s683, 4
          %s695 = int_to_ptr.vmem [resolvable:$true] %s694
          %s696 = sshll.u32 %s693, 4
          %s697 = int_to_ptr.hbm [resolvable:$true] %s696
          %702 = dma.vmem_to_hbm [thread:$0]  %s695, 512, %s697, %s680, 256, 256, 16
        $region68: #{tpu_custom_call.1} parent=51 // pred_fallthru
          _
      $region52: #{tpu_custom_call.1} parent=5 // pred_fallthru
        _
      %p703 = scmp.le.s32.totalorder 2, %s23
      // Predicated region
      $region69: #{tpu_custom_call.1} parent=5 // pred_check
        %p704 = pneg %p703
      $region70: #{tpu_custom_call.1} parent=5 // pred_check_branch
        %706 = sbr.rel (%p704) target = $region72
      $region71: #{tpu_custom_call.1} parent=5 // pred_region
        %s707 = ssub.s32 %s23, 2
        // Predicated region
        $region73: #{tpu_custom_call.1} parent=71 // pred_check
          %p708 = pneg %p274
        $region74: #{tpu_custom_call.1} parent=71 // pred_check_branch
          %710 = sbr.rel (%p708) target = $region76
        $region75: #{tpu_custom_call.1} parent=71 // pred_region
          %s711 = sand.u32 %s259, 1
          %s712 = scalar_lea.sflag [#allocation4], %s711
          %s713 = sand.u32 %s259, 1
          %s714 = smul.addr %s713, 32
          %s715 = scalar_lea.vmem [#allocation8], %s714
          %717 = dma.done %s712, 512
        $region76: #{tpu_custom_call.1} parent=71 // pred_fallthru
          _
      $region72: #{tpu_custom_call.1} parent=5 // pred_fallthru
        _
    $region6: #{tpu_custom_call.1} parent=1 // loop_footer
      %s27 = sadd.s32 1, %s23
    $region7: #{tpu_custom_call.1} parent=1 // loop_footer_branch
      %22 = sbr.rel target = $region3
    $region8: #{tpu_custom_call.1} parent=1 // loop_exit
      _
    %718 = vsyncpa [#allocation3], 1
    %s719 = scalar_lea.sflag [#allocation3], 1
    %720 = vsyncpa %s719, 1
    %721 = vsyncpa [#allocation6], 1
    %s722 = scalar_lea.sflag [#allocation6], 1
    %723 = vsyncpa %s722, 1
    %724 = vsyncpa [#allocation4], 1
    %s725 = scalar_lea.sflag [#allocation4], 1
    %726 = vsyncpa %s725, 1

</llo_original>
